<compile_context>
chip_gen: v5e
topology: v5e:2x2
jax: 0.10.0
libtpu: 0.0.40
codegen_flags: <defaults>
</compile_context>

<pallas_src>
import jax
import jax.numpy as jnp
from jax import lax
from jax.experimental import pallas as pl
from jax.experimental.pallas import tpu as pltpu

MAX_SAMPLES = 1024


# ----------------------------- Pallas kernel ------------------------------ #
def _make_ot_kernel(block_b, c, n, tile_n, cov_bf16):
    num_col_tiles = n // tile_n
    inv_n = 1.0 / float(n)
    inv_nm1 = 1.0 / float(n - 1)
    cov_dtype = jnp.bfloat16 if cov_bf16 else jnp.float32

    def per_element(x, y):
        # x, y: (c, n) float32, channel-major (lane dim = samples, dense).
        # ---- style loss: relaxed EMD over pairwise cosine distances --------
        x_ss = jnp.sum(x * x, axis=0, keepdims=True)                  # (1, n)
        y_ss = jnp.sum(y * y, axis=0, keepdims=True)                  # (1, n)
        x_hat = x * lax.rsqrt(jnp.maximum(x_ss, 1e-20))
        y_hat = y * lax.rsqrt(jnp.maximum(y_ss, 1e-20))

        def tile_contrib(y_tile):
            cos = lax.dot_general(                                    # (n, tile_n)
                x_hat, y_tile, (((0,), (0,)), ((), ())),
                preferred_element_type=jnp.float32)
            col_max_sum = jnp.sum(jnp.max(cos, axis=0))               # scalar
            row_max = jnp.max(cos, axis=1, keepdims=True)             # (n, 1)
            return col_max_sum, row_max

        if num_col_tiles == 1:
            m1_sum, row_max = tile_contrib(y_hat)
        else:
            def col_body(t, carry):
                m1_sum, row_max = carry
                start = t * tile_n
                if tile_n % 128 == 0:
                    start = pl.multiple_of(start, 128)
                y_tile = lax.dynamic_slice_in_dim(y_hat, start, tile_n, axis=1)
                s, rm = tile_contrib(y_tile)
                return m1_sum + s, jnp.maximum(row_max, rm)
            m1_sum, row_max = lax.fori_loop(
                0, num_col_tiles, col_body,
                (jnp.float32(0.0), jnp.full((n, 1), -jnp.inf, jnp.float32)))

        # dist = 1 - cos  =>  min(dist) = 1 - max(cos); dist never built.
        m1 = m1_sum * inv_n                   # mean over y of max-over-x cos
        m2 = jnp.mean(row_max)                # mean over x of max-over-y cos
        remd = 1.0 - jnp.minimum(m1, m2)      # == max of the two mean min-dists

        # ---- moment loss: first + second moment matching -------------------
        mu_x = jnp.mean(x, axis=1, keepdims=True)                     # (c, 1)
        mu_y = jnp.mean(y, axis=1, keepdims=True)
        mu_diff = jnp.mean(jnp.abs(mu_x - mu_y))
        x_c = (x - mu_x).astype(cov_dtype)
        y_c = (y - mu_y).astype(cov_dtype)
        x_cov = lax.dot_general(x_c, x_c, (((1,), (1,)), ((), ())),
                                preferred_element_type=jnp.float32) * inv_nm1
        y_cov = lax.dot_general(y_c, y_c, (((1,), (1,)), ((), ())),
                                preferred_element_type=jnp.float32) * inv_nm1
        cov_diff = jnp.mean(jnp.abs(x_cov - y_cov))

        return remd + mu_diff + cov_diff

    def kernel(x_ref, y_ref, loss_ref):
        # x_ref, y_ref: (block_b, c, n) VMEM; loss_ref: (block_b, 1, 1) VMEM.
        if block_b == 1:
            total = per_element(x_ref[0].astype(jnp.float32),
                                y_ref[0].astype(jnp.float32))
            loss_ref[0] = jnp.full((1, 1), total, dtype=jnp.float32)
        else:
            # fori_loop (not a static Python for) so each element's (c, n) and
            # cos-tile temps are dead before the next element's matmuls issue.
            def batch_body(bi, carry):
                total = per_element(x_ref[bi].astype(jnp.float32),
                                    y_ref[bi].astype(jnp.float32))
                loss_ref[bi] = jnp.full((1, 1), total, dtype=jnp.float32)
                return carry
            lax.fori_loop(0, block_b, batch_body, 0, unroll=2)

    return kernel


def _pick_tile_n(n):
    """y-column tile for the cosine matmul: keeps the (n, tile_n) cos tile
    small (<= ~2 MiB f32) so it never round-trips through VMEM en masse."""
    if n <= 512:
        return n
    for t in (512, 384, 256, 128):
        if n % t == 0:
            return t
    return n                       # no clean divisor -> untiled (n <= 1024 anyway)


def _pick_block_b(b, c, n, tile_n, budget_bytes=12 << 20):
    """Batch elements per grid step: bounded by a conservative scoped-VMEM
    budget (valid on every generation) that includes the double-buffered input
    tiles, and by b // 2 so the grid keeps >= 2 steps for v7x megacore."""
    per_elem = tile_n * n * 4 + 8 * c * n * 4        # cos tile + (c, n) f32 temps
    io_per_elem = 2 * 2 * c * n * 4                   # 2 inputs x 2 pipeline bufs
    max_bt = int(max(1, budget_bytes // max(per_elem + io_per_elem, 1)))
    max_bt = min(max_bt, 8)
    if b >= 2:
        max_bt = min(max_bt, b // 2)                  # >= 2 grid steps
    bt = 1
    for cand in range(1, max_bt + 1):
        if b % cand == 0:
            bt = cand
    return bt


def _vmem_limit_bytes(block_b, c, n, tile_n):
    io = 2 * 2 * block_b * c * n * 4
    temps = tile_n * n * 4 + 8 * c * n * 4
    need = io + temps
    # >= 16 MiB (smallest scoped default, v5e), <= 48 MiB (< v7x physical 64 MiB)
    return int(min(48 << 20, max(16 << 20, 2 * need)))


def ot_loss_pallas(x_feats, y_feats, cov_bf16=None):
    """x_feats, y_feats: (b, c, n) float32 channel-major -> per-batch loss (b,)."""
    b, c, n = x_feats.shape
    assert y_feats.shape == (b, c, n)
    assert n > 1, "need at least 2 samples for the covariance divisor (n - 1)"

    if cov_bf16 is None:
        # bf16 operands only pay off on the large-K covariance matmuls; the
        # small-c cosine matmul stays f32 (keeps f32-reference accuracy).
        cov_bf16 = c >= 128

    tile_n = _pick_tile_n(n)
    block_b = _pick_block_b(b, c, n, tile_n)
    kernel = _make_ot_kernel(block_b, c, n, tile_n, cov_bf16)

    cost = pl.CostEstimate(
        flops=2 * b * (n * n * c + 2 * c * c * n),
        transcendentals=2 * b * n,                    # per-column rsqrt
        bytes_accessed=4 * (2 * b * c * n + b))

    losses = pl.pallas_call(
        kernel,
        out_shape=jax.ShapeDtypeStruct((b, 1, 1), jnp.float32),
        grid_spec=pltpu.PrefetchScalarGridSpec(
            num_scalar_prefetch=0,
            grid=(b // block_b,),
            in_specs=[
                pl.BlockSpec((block_b, c, n), lambda g: (g, 0, 0)),
                pl.BlockSpec((block_b, c, n), lambda g: (g, 0, 0)),
            ],
            out_specs=pl.BlockSpec((block_b, 1, 1), lambda g: (g, 0, 0)),
        ),
        compiler_params=pltpu.CompilerParams(
            dimension_semantics=("parallel",),        # batch blocks -> megacore
            vmem_limit_bytes=_vmem_limit_bytes(block_b, c, n, tile_n)),
        cost_estimate=cost,
    )(x_feats, y_feats)
    return losses.reshape(b)


# ------------------------------ JAX glue ---------------------------------- #
def _per_batch_permutation(key, b, n, n_samples):
    keys = jax.random.split(key, b)
    perm = jax.vmap(lambda k: jax.random.permutation(k, n))(keys)
    return perm[:, :n_samples]                        # (b, n_samples)


class OptimalTransportLossPallas:
    """Mirror of the PyTorch module: stores target as (b, c, w*h); forward
    computes self.loss and returns the input unchanged."""

    def __init__(self, target_feature):
        b, c, h, w = target_feature.shape
        self.target = target_feature.reshape(b, c, h * w)     # (b_y, c, n_y)

    def _prepare(self, inp, key):
        b, c, h, w = inp.shape
        x = inp.reshape(b, c, h * w)                           # (b, c, n_x)
        y = self.target
        b_y, c_y, n_y = y.shape
        batch_size = b // b_y
        assert batch_size * b_y == b, \
            "Batch size must be a multiple of the number of target images"
        y = jnp.tile(y, (batch_size, 1, 1))                    # (b, c, n_y)

        n_x = h * w
        n_samples = min(n_x, n_y, MAX_SAMPLES)
        kx, ky = jax.random.split(key)
        idx_x = _per_batch_permutation(kx, b, n_x, n_samples)
        idx_y = _per_batch_permutation(ky, b, n_y, n_samples)
        # gather along the spatial dim (matches torch .gather on argsort(rand))
        # TODO(synk): for h*w >> MAX_SAMPLES, scalar-prefetch idx_x/idx_y and
        # gather rows in-kernel to skip this XLA gather's extra HBM round trip.
        x = jnp.take_along_axis(x, idx_x[:, None, :], axis=-1)   # (b, c, ns)
        y = jnp.take_along_axis(y, idx_y[:, None, :], axis=-1)   # (b, c, ns)
        # kept channel-major (b, c, ns): lane-dense kernel layout, no HBM transpose.
        return x, y

    def __call__(self, inp, key):
        x, y = self._prepare(inp, key)
        per_batch = ot_loss_pallas(x, y)
        self.loss = jnp.mean(per_batch)
        return inp


# --------------------------- pure-JAX reference ---------------------------- #
def _ot_loss_ref(x, y):
    # x, y: (b, n, c) -- exactly the torch module's math.
    xn = jnp.linalg.norm(x, axis=2, keepdims=True)
    yn = jnp.linalg.norm(y, axis=2, keepdims=True)
    dots = jnp.einsum('bnc,bmc->bnm', x, y)
    dist = 1.0 - dots / (xn * jnp.swapaxes(yn, 1, 2) + 1e-10)
    m1 = dist.min(axis=1).mean(axis=1)
    m2 = dist.min(axis=2).mean(axis=1)
    remd = jnp.maximum(m1, m2)

    mu_x = x.mean(axis=1, keepdims=True)
    mu_y = y.mean(axis=1, keepdims=True)
    mu_diff = jnp.abs(mu_x - mu_y).mean(axis=(1, 2))
    xc, yc = x - mu_x, y - mu_y
    x_cov = jnp.einsum('bnc,bnd->bcd', xc, xc) / (x.shape[1] - 1)
    y_cov = jnp.einsum('bnc,bnd->bcd', yc, yc) / (y.shape[1] - 1)
    cov_diff = jnp.abs(x_cov - y_cov).mean(axis=(1, 2))
    return remd + mu_diff + cov_diff


if __name__ == "__main__":
    key = jax.random.PRNGKey(0)
    k_in, k_tgt, k_samp = jax.random.split(key, 3)

    # input: (b=2, c=4, 16, 16); target: (b_y=1, c=4, 16, 16) -> repeated x2
    inp = jax.random.normal(k_in, (2, 4, 16, 16), dtype=jnp.float32)
    target = jax.random.normal(k_tgt, (1, 4, 16, 16), dtype=jnp.float32)

    module = OptimalTransportLossPallas(target)

    out = module(inp, k_samp)
    loss = module.loss
    jax.block_until_ready((out, loss))

    # correctness check against the pure-JAX reference on the same samples
    x_s, y_s = module._prepare(inp, k_samp)                   # (b, c, n)
    ref = jnp.mean(_ot_loss_ref(jnp.swapaxes(x_s, 1, 2),
                                jnp.swapaxes(y_s, 1, 2)))
    assert out.shape == inp.shape
    assert jnp.allclose(loss, ref, rtol=1e-4, atol=1e-5), (loss, ref)

    print("KERNEL_OK")
</pallas_src>

<mosaic_0001>
module attributes {stable_mosaic.version = 11 : i64} {
  func.func @kernel(%arg0: i32, %arg1: memref<1x4x256xf32, #tpu.memory_space<vmem>>, %arg2: memref<1x4x256xf32, #tpu.memory_space<vmem>>, %arg3: memref<1x1x1xf32, #tpu.memory_space<vmem>>) attributes {dimension_semantics = [#tpu.dimension_semantics<parallel>], iteration_bounds = array<i64: 2>, scalar_prefetch = 0 : i64, scratch_operands = 0 : i64, tpu.core_type = #tpu.core_type<tc>, window_params = [{transform_indices = @transform_0, window_bounds = array<i64: 1, 4, 256>}, {transform_indices = @transform_1, window_bounds = array<i64: 1, 4, 256>}, {transform_indices = @transform_2, window_bounds = array<i64: 1, 1, 1>}]} {
    %c0 = arith.constant 0 : index
    %c0_0 = arith.constant 0 : index
    %c0_1 = arith.constant 0 : index
    %0 = vector.load %arg1[%c0, %c0_0, %c0_1] : memref<1x4x256xf32, #tpu.memory_space<vmem>>, vector<1x4x256xf32>
    %1 = vector.shape_cast %0 : vector<1x4x256xf32> to vector<4x256xf32>
    %c0_2 = arith.constant 0 : index
    %c0_3 = arith.constant 0 : index
    %c0_4 = arith.constant 0 : index
    %2 = vector.load %arg2[%c0_2, %c0_3, %c0_4] : memref<1x4x256xf32, #tpu.memory_space<vmem>>, vector<1x4x256xf32>
    %3 = vector.shape_cast %2 : vector<1x4x256xf32> to vector<4x256xf32>
    %4 = arith.mulf %1, %1 : vector<4x256xf32>
    %cst = arith.constant dense<0.000000e+00> : vector<256xf32>
    %5 = vector.multi_reduction <add>, %4, %cst [0] : vector<4x256xf32> to vector<256xf32>
    %6 = vector.shape_cast %5 : vector<256xf32> to vector<1x256xf32>
    %7 = arith.mulf %3, %3 : vector<4x256xf32>
    %cst_5 = arith.constant dense<0.000000e+00> : vector<256xf32>
    %8 = vector.multi_reduction <add>, %7, %cst_5 [0] : vector<4x256xf32> to vector<256xf32>
    %9 = vector.shape_cast %8 : vector<256xf32> to vector<1x256xf32>
    %cst_6 = arith.constant 9.99999968E-21 : f32
    %10 = vector.broadcast %cst_6 : f32 to vector<1x256xf32>
    %11 = arith.maximumf %6, %10 : vector<1x256xf32>
    %12 = math.rsqrt %11 : vector<1x256xf32>
    %13 = vector.broadcast %12 : vector<1x256xf32> to vector<4x256xf32>
    %14 = arith.mulf %1, %13 : vector<4x256xf32>
    %cst_7 = arith.constant 9.99999968E-21 : f32
    %15 = vector.broadcast %cst_7 : f32 to vector<1x256xf32>
    %16 = arith.maximumf %9, %15 : vector<1x256xf32>
    %17 = math.rsqrt %16 : vector<1x256xf32>
    %18 = vector.broadcast %17 : vector<1x256xf32> to vector<4x256xf32>
    %19 = arith.mulf %3, %18 : vector<4x256xf32>
    %cst_8 = arith.constant dense<0.000000e+00> : vector<256x256xf32>
    %20 = tpu.matmul %14, %19, %cst_8 {dimension_numbers = #tpu.dot_dimension_numbers<[0], [0], [1], [1], [0, 1, 1, 1], [], []>} : vector<4x256xf32>, vector<4x256xf32>, vector<256x256xf32> -> vector<256x256xf32>
    %cst_9 = arith.constant dense<0xFF800000> : vector<256xf32>
    %21 = vector.multi_reduction <maximumf>, %20, %cst_9 [0] : vector<256x256xf32> to vector<256xf32>
    %22 = vector.shape_cast %21 : vector<256xf32> to vector<1x256xf32>
    %cst_10 = arith.constant dense<0.000000e+00> : vector<1xf32>
    %23 = vector.multi_reduction <add>, %22, %cst_10 [1] : vector<1x256xf32> to vector<1xf32>
    %24 = vector.shape_cast %23 : vector<1xf32> to vector<1x1xf32>
    %25 = vector.extract %24[0, 0] : f32 from vector<1x1xf32>
    %cst_11 = arith.constant dense<0xFF800000> : vector<256xf32>
    %26 = vector.multi_reduction <maximumf>, %20, %cst_11 [1] : vector<256x256xf32> to vector<256xf32>
    %27 = vector.shape_cast %26 : vector<256xf32> to vector<256x1xf32>
    %cst_12 = arith.constant 3.906250e-03 : f32
    %28 = arith.mulf %25, %cst_12 : f32
    %29 = vector.shape_cast %27 : vector<256x1xf32> to vector<1x256x1xf32>
    %cst_13 = arith.constant dense<0.000000e+00> : vector<1xf32>
    %30 = vector.multi_reduction <add>, %29, %cst_13 [1, 2] : vector<1x256x1xf32> to vector<1xf32>
    %31 = vector.shape_cast %30 : vector<1xf32> to vector<1x1x1xf32>
    %32 = vector.extract %31[0, 0, 0] : f32 from vector<1x1x1xf32>
    %cst_14 = arith.constant 2.560000e+02 : f32
    %33 = arith.divf %32, %cst_14 : f32
    %34 = arith.minimumf %28, %33 : f32
    %cst_15 = arith.constant 1.000000e+00 : f32
    %35 = arith.subf %cst_15, %34 : f32
    %cst_16 = arith.constant dense<0.000000e+00> : vector<4xf32>
    %36 = vector.multi_reduction <add>, %1, %cst_16 [1] : vector<4x256xf32> to vector<4xf32>
    %37 = vector.shape_cast %36 : vector<4xf32> to vector<4x1xf32>
    %cst_17 = arith.constant 2.560000e+02 : f32
    %38 = vector.broadcast %cst_17 : f32 to vector<4x1xf32>
    %39 = arith.divf %37, %38 : vector<4x1xf32>
    %cst_18 = arith.constant dense<0.000000e+00> : vector<4xf32>
    %40 = vector.multi_reduction <add>, %3, %cst_18 [1] : vector<4x256xf32> to vector<4xf32>
    %41 = vector.shape_cast %40 : vector<4xf32> to vector<4x1xf32>
    %cst_19 = arith.constant 2.560000e+02 : f32
    %42 = vector.broadcast %cst_19 : f32 to vector<4x1xf32>
    %43 = arith.divf %41, %42 : vector<4x1xf32>
    %44 = arith.subf %39, %43 : vector<4x1xf32>
    %45 = math.absf %44 : vector<4x1xf32>
    %46 = vector.shape_cast %45 : vector<4x1xf32> to vector<1x4x1xf32>
    %cst_20 = arith.constant dense<0.000000e+00> : vector<1xf32>
    %47 = vector.multi_reduction <add>, %46, %cst_20 [1, 2] : vector<1x4x1xf32> to vector<1xf32>
    %48 = vector.shape_cast %47 : vector<1xf32> to vector<1x1x1xf32>
    %49 = vector.extract %48[0, 0, 0] : f32 from vector<1x1x1xf32>
    %cst_21 = arith.constant 4.000000e+00 : f32
    %50 = arith.divf %49, %cst_21 : f32
    %51 = vector.broadcast %39 : vector<4x1xf32> to vector<4x256xf32>
    %52 = arith.subf %1, %51 : vector<4x256xf32>
    %53 = vector.broadcast %43 : vector<4x1xf32> to vector<4x256xf32>
    %54 = arith.subf %3, %53 : vector<4x256xf32>
    %cst_22 = arith.constant dense<0.000000e+00> : vector<4x4xf32>
    %55 = tpu.matmul %52, %52, %cst_22 {dimension_numbers = #tpu.dot_dimension_numbers<[1], [1], [0], [0], [0, 0, 1, 0], [], []>} : vector<4x256xf32>, vector<4x256xf32>, vector<4x4xf32> -> vector<4x4xf32>
    %cst_23 = arith.constant 0.00392156886 : f32
    %56 = vector.broadcast %cst_23 : f32 to vector<4x4xf32>
    %57 = arith.mulf %55, %56 : vector<4x4xf32>
    %cst_24 = arith.constant dense<0.000000e+00> : vector<4x4xf32>
    %58 = tpu.matmul %54, %54, %cst_24 {dimension_numbers = #tpu.dot_dimension_numbers<[1], [1], [0], [0], [0, 0, 1, 0], [], []>} : vector<4x256xf32>, vector<4x256xf32>, vector<4x4xf32> -> vector<4x4xf32>
    %cst_25 = arith.constant 0.00392156886 : f32
    %59 = vector.broadcast %cst_25 : f32 to vector<4x4xf32>
    %60 = arith.mulf %58, %59 : vector<4x4xf32>
    %61 = arith.subf %57, %60 : vector<4x4xf32>
    %62 = math.absf %61 : vector<4x4xf32>
    %63 = vector.shape_cast %62 : vector<4x4xf32> to vector<1x4x4xf32>
    %cst_26 = arith.constant dense<0.000000e+00> : vector<1xf32>
    %64 = vector.multi_reduction <add>, %63, %cst_26 [1, 2] : vector<1x4x4xf32> to vector<1xf32>
    %65 = vector.shape_cast %64 : vector<1xf32> to vector<1x1x1xf32>
    %66 = vector.extract %65[0, 0, 0] : f32 from vector<1x1x1xf32>
    %cst_27 = arith.constant 1.600000e+01 : f32
    %67 = arith.divf %66, %cst_27 : f32
    %68 = arith.addf %35, %50 : f32
    %69 = arith.addf %68, %67 : f32
    %70 = vector.broadcast %69 : f32 to vector<1x1xf32>
    %c0_28 = arith.constant 0 : index
    %c0_29 = arith.constant 0 : index
    %c0_30 = arith.constant 0 : index
    %71 = vector.load %arg3[%c0_28, %c0_29, %c0_30] : memref<1x1x1xf32, #tpu.memory_space<vmem>>, vector<1x1x1xf32>
    %72 = vector.shape_cast %71 : vector<1x1x1xf32> to vector<1x1xf32>
    %73 = vector.shape_cast %70 : vector<1x1xf32> to vector<1x1x1xf32>
    tpu.vector_store %arg3[%c0_28, %c0_29, %c0_30], %73 {strides = array<i32>} : memref<1x1x1xf32, #tpu.memory_space<vmem>>, vector<1x1x1xf32>,
    return
  }
  func.func @transform_0(%arg0: i32) -> (i32, i32, i32) {
    %c0_i32 = arith.constant 0 : i32
    %c0_i32_0 = arith.constant 0 : i32
    %c0_i32_1 = arith.constant 0 : i32
    return %arg0, %c0_i32, %c0_i32_0 : i32, i32, i32
  }
  func.func @transform_1(%arg0: i32) -> (i32, i32, i32) {
    %c0_i32 = arith.constant 0 : i32
    %c0_i32_0 = arith.constant 0 : i32
    %c0_i32_1 = arith.constant 0 : i32
    return %arg0, %c0_i32, %c0_i32_0 : i32, i32, i32
  }
  func.func @transform_2(%arg0: i32) -> (i32, i32, i32) {
    %c0_i32 = arith.constant 0 : i32
    %c0_i32_0 = arith.constant 0 : i32
    %c0_i32_1 = arith.constant 0 : i32
    return %arg0, %c0_i32, %c0_i32_0 : i32, i32, i32
  }
}

</mosaic_0001>

<llo_original>
// kernel: tpu_custom_call.1
$region0: #{tpu_custom_call.1}
  #allocation0 [shape = 'u32[]', space=smem, size = 0x4, offset = 0x4, fixed_abs, tag = 'smem constant byte address 0x4 - core index']
  #allocation1 [shape = 'u32[72,128]{1,0:T(1,128)}', space=vmem, size = 0x9000, scoped, tag = 'internal scratch']
  %s0 = inlined_call_operand.hbm [shape: f32[2,4,256], index: 0, kind: input, shape index: {}]
  %s1 = inlined_call_operand.hbm [shape: f32[2,4,256], index: 1, kind: input, shape index: {}]
  %s2 = inlined_call_operand.vmem [shape: f32[2,1,1], index: 2, kind: output, shape index: {}]
  %s3 = sld [smem:[#allocation0]]
  $region49: #{tpu_custom_call.1} parent=0
    _
  %s5 = ssub.s32 1, %s3
  %s6 = scalar_select 0, %s5, %s3
  $region1: #{tpu_custom_call.1} parent=0
    #allocation2 [shape = 'u8[8192]{0}', space=vmem, size = 0x2000, scoped, tag = 'input window, operand 0']
    #allocation3 [shape = 's32[2]{0}', space=sflag, size = 0x8, scoped, tag = 'scoped memory for tpu_custom_call.1']
    #allocation4 [shape = 'u8[8192]{0}', space=vmem, size = 0x2000, scoped, tag = 'input window, operand 1']
    #allocation5 [shape = 's32[2]{0}', space=sflag, size = 0x8, scoped, tag = 'scoped memory for tpu_custom_call.1']
    %7 = vsyncpa [#allocation3], 0
    %s8 = scalar_lea.sflag [#allocation3], 1
    %9 = vsyncpa %s8, 0
    %10 = vsyncpa [#allocation5], 0
    %s11 = scalar_lea.sflag [#allocation5], 1
    %12 = vsyncpa %s11, 0
    loop: start=0, step=1, limit=4
    $region2: #{tpu_custom_call.1} parent=1 // loop_pre_header
      _
    $region3: #{tpu_custom_call.1} parent=1 // loop_header
      %s14 = sphi 0, %s18
      %p15 = scmp.ge.s32.totalorder %s14, 4
      %s24 = sphi 0, %s26
      %s27 = sphi 0, %s24
      %s28 = sphi 0, %s27
      %s44 = sphi 0, %s28
      %s50 = sphi 0, %s52
      %s53 = sphi 0, %s50
      %s54 = sphi 0, %s53
      %s70 = sphi 0, %s54
      %s76 = sphi 0, %s78
      %s79 = sphi 0, %s76
      %s80 = sphi 0, %s79
      %s96 = sphi 0, %s80
    $region4: #{tpu_custom_call.1} parent=1 // loop_header_branch
      %17 = sbr.rel (%p15) target = $region8
    $region5: #{tpu_custom_call.1} parent=1 // loop_body
      %s19 = ssub.s32 %s14, 1
      %s20 = ssub.s32 %s14, 2
      %s21 = sadd.s32 %s14, 1
      %s22 = ssub.s32 %s14, %s21
      %p23 = scmp.eq.s32.totalorder %s22, 0
      %s25 = sadd.s32 %s24, 1
      %s26 = scalar_select %p23, %s24, %s25
      %p29 = pneg %p23
      %p30 = scmp.eq.s32.totalorder %s14, 1
      %p31 = por %p29, %p30
      %p32 = scmp.ne.s32.totalorder %s24, %s27
      %p33 = scmp.eq.s32.totalorder %s14, 0
      %p34 = por %p32, %p33
      %p35 = scmp.ne.s32.totalorder %s24, %s27
      %p36 = scmp.eq.s32.totalorder %s19, 1
      %p37 = por %p35, %p36
      %p38 = scmp.ne.s32.totalorder %s27, %s28
      %p39 = scmp.eq.s32.totalorder %s19, 0
      %p40 = por %p38, %p39
      %p41 = scmp.ne.s32.totalorder %s27, %s28
      %p42 = scmp.eq.s32.totalorder %s20, 1
      %p43 = por %p41, %p42
      %p45 = scmp.ne.s32.totalorder %s28, %s44
      %p46 = scmp.eq.s32.totalorder %s20, 0
      %p47 = por %p45, %p46
      %s48 = ssub.s32 %s14, %s21
      %p49 = scmp.eq.s32.totalorder %s48, 0
      %s51 = sadd.s32 %s50, 1
      %s52 = scalar_select %p49, %s50, %s51
      %p55 = pneg %p49
      %p56 = scmp.eq.s32.totalorder %s14, 1
      %p57 = por %p55, %p56
      %p58 = scmp.ne.s32.totalorder %s50, %s53
      %p59 = scmp.eq.s32.totalorder %s14, 0
      %p60 = por %p58, %p59
      %p61 = scmp.ne.s32.totalorder %s50, %s53
      %p62 = scmp.eq.s32.totalorder %s19, 1
      %p63 = por %p61, %p62
      %p64 = scmp.ne.s32.totalorder %s53, %s54
      %p65 = scmp.eq.s32.totalorder %s19, 0
      %p66 = por %p64, %p65
      %p67 = scmp.ne.s32.totalorder %s53, %s54
      %p68 = scmp.eq.s32.totalorder %s20, 1
      %p69 = por %p67, %p68
      %p71 = scmp.ne.s32.totalorder %s54, %s70
      %p72 = scmp.eq.s32.totalorder %s20, 0
      %p73 = por %p71, %p72
      %s74 = ssub.s32 %s14, %s21
      %p75 = scmp.eq.s32.totalorder %s74, 0
      %s77 = sadd.s32 %s76, 1
      %s78 = scalar_select %p75, %s76, %s77
      %p81 = pneg %p75
      %p82 = scmp.eq.s32.totalorder %s14, 1
      %p83 = por %p81, %p82
      %p84 = scmp.ne.s32.totalorder %s76, %s79
      %p85 = scmp.eq.s32.totalorder %s14, 0
      %p86 = por %p84, %p85
      %p87 = scmp.ne.s32.totalorder %s76, %s79
      %p88 = scmp.eq.s32.totalorder %s19, 1
      %p89 = por %p87, %p88
      %p90 = scmp.ne.s32.totalorder %s79, %s80
      %p91 = scmp.eq.s32.totalorder %s19, 0
      %p92 = por %p90, %p91
      %p93 = scmp.ne.s32.totalorder %s79, %s80
      %p94 = scmp.eq.s32.totalorder %s20, 1
      %p95 = por %p93, %p94
      %p97 = scmp.ne.s32.totalorder %s80, %s96
      %p98 = scmp.eq.s32.totalorder %s20, 0
      %p99 = por %p97, %p98
      %p100 = scmp.le.s32.totalorder 1, %s14
      %p101 = scmp.lt.s32.totalorder %s14, 3
      %p102 = pnand %p100, %p101
      %p103 = pneg %p102
      // Predicated region
      $region9: #{tpu_custom_call.1} parent=5 // pred_check
        _
      $region10: #{tpu_custom_call.1} parent=5 // pred_check_branch
        %105 = sbr.rel (%p102) target = $region12
      $region11: #{tpu_custom_call.1} parent=5 // pred_region
        %s106 = ssub.s32 %s14, 1
      $region12: #{tpu_custom_call.1} parent=5 // pred_fallthru
        _
      %p107 = scmp.lt.s32.totalorder %s14, 2
      // Predicated region
      $region13: #{tpu_custom_call.1} parent=5 // pred_check
        %p108 = pneg %p107
      $region14: #{tpu_custom_call.1} parent=5 // pred_check_branch
        %110 = sbr.rel (%p108) target = $region16
      $region15: #{tpu_custom_call.1} parent=5 // pred_region
        // Predicated region
        $region17: #{tpu_custom_call.1} parent=15 // pred_check
          %p111 = pneg %p34
        $region18: #{tpu_custom_call.1} parent=15 // pred_check_branch
          %113 = sbr.rel (%p111) target = $region20
        $region19: #{tpu_custom_call.1} parent=15 // pred_region
          %s114 = sand.u32 %s24, 1
          %s115 = scalar_lea.sflag [#allocation3], %s114
          %s116 = sand.u32 %s24, 1
          %s117 = smul.addr %s116, 8
          %s118 = scalar_lea.vmem [#allocation2], %s117
          %120 = vsyncadd %s115, 0
          %s121 = smul.addr %s14, 2
          %s122 = smul.addr %s121, 4
          %s123 = scalar_lea.hbm %s0, %s122
          %s125 = sshll.u32 %s123, 4
          %s126 = int_to_ptr.hbm [resolvable:$true] %s125
          %s127 = sshll.u32 %s118, 4
          %s128 = int_to_ptr.vmem [resolvable:$true] %s127
          %130 = dma.hbm_to_vmem [thread:$0]  %s126, 128, %s128, %s115
        $region20: #{tpu_custom_call.1} parent=15 // pred_fallthru
          _
        // Predicated region
        $region21: #{tpu_custom_call.1} parent=15 // pred_check
          %p131 = pneg %p60
        $region22: #{tpu_custom_call.1} parent=15 // pred_check_branch
          %133 = sbr.rel (%p131) target = $region24
        $region23: #{tpu_custom_call.1} parent=15 // pred_region
          %s134 = sand.u32 %s50, 1
          %s135 = scalar_lea.sflag [#allocation5], %s134
          %s136 = sand.u32 %s50, 1
          %s137 = smul.addr %s136, 8
          %s138 = scalar_lea.vmem [#allocation4], %s137
          %140 = vsyncadd %s135, 0
          %s141 = smul.addr %s14, 2
          %s142 = smul.addr %s141, 4
          %s143 = scalar_lea.hbm %s1, %s142
          %s145 = sshll.u32 %s143, 4
          %s146 = int_to_ptr.hbm [resolvable:$true] %s145
          %s147 = sshll.u32 %s138, 4
          %s148 = int_to_ptr.vmem [resolvable:$true] %s147
          %150 = dma.hbm_to_vmem [thread:$0]  %s146, 128, %s148, %s135
        $region24: #{tpu_custom_call.1} parent=15 // pred_fallthru
          _
      $region16: #{tpu_custom_call.1} parent=5 // pred_fallthru
        _
      %p151 = scmp.le.s32.totalorder 1, %s14
      %p152 = scmp.lt.s32.totalorder %s14, 3
      %p153 = pnand %p151, %p152
      %p154 = pneg %p153
      // Predicated region
      $region25: #{tpu_custom_call.1} parent=5 // pred_check
        _
      $region26: #{tpu_custom_call.1} parent=5 // pred_check_branch
        %156 = sbr.rel (%p153) target = $region28
      $region27: #{tpu_custom_call.1} parent=5 // pred_region
        %s157 = ssub.s32 %s14, 1
        %s158 = sand.u32 %s27, 1
        %s159 = scalar_lea.sflag [#allocation3], %s158
        %s160 = sand.u32 %s27, 1
        %s161 = smul.addr %s160, 8
        %s162 = scalar_lea.vmem [#allocation2], %s161
        // Predicated region
        $region29: #{tpu_custom_call.1} parent=27 // pred_check
          %p163 = pneg %p40
        $region30: #{tpu_custom_call.1} parent=27 // pred_check_branch
          %165 = sbr.rel (%p163) target = $region32
        $region31: #{tpu_custom_call.1} parent=27 // pred_region
          %167 = dma.done %s159, 128
        $region32: #{tpu_custom_call.1} parent=27 // pred_fallthru
          _
        %s168 = sand.u32 %s53, 1
        %s169 = scalar_lea.sflag [#allocation5], %s168
        %s170 = sand.u32 %s53, 1
        %s171 = smul.addr %s170, 8
        %s172 = scalar_lea.vmem [#allocation4], %s171
        // Predicated region
        $region33: #{tpu_custom_call.1} parent=27 // pred_check
          %p173 = pneg %p66
        $region34: #{tpu_custom_call.1} parent=27 // pred_check_branch
          %175 = sbr.rel (%p173) target = $region36
        $region35: #{tpu_custom_call.1} parent=27 // pred_region
          %177 = dma.done %s169, 128
        $region36: #{tpu_custom_call.1} parent=27 // pred_fallthru
          _
        %s178 = sand.u32 %s27, 1
        %s179 = scalar_lea.sflag [#allocation3], %s178
        %s180 = sand.u32 %s27, 1
        %s181 = smul.addr %s180, 8
        %s182 = scalar_lea.vmem [#allocation2], %s181
        %p183 = pneg %p40
        %p184 = pneg %p37
        %s185 = sand.u32 %s53, 1
        %s186 = scalar_lea.sflag [#allocation5], %s185
        %s187 = sand.u32 %s53, 1
        %s188 = smul.addr %s187, 8
        %s189 = scalar_lea.vmem [#allocation4], %s188
        %p190 = pneg %p66
        %p191 = pneg %p63
        %p192 = pneg %p92
        %p193 = pneg %p89
        %p194 = scmp.lt.s32.totalorder %s19, 1
        %s195 = scalar_select %p194, %s19, 1
        %s196 = scalar_lea.vmem %s2, %s195
        %p197 = scmp.lt.s32.totalorder %s19, 1
        %s198 = scalar_select %p197, %s19, 1
        %s199 = scalar_lea.vmem %s2, %s198
        %v200 = vld [vmem:[%s162] sm:$0xff]
        %v201 = vld [vmem:[%s172] sm:$0xff]
        %v202 = vmul.f32 %v200, %v200
        %204 = vst [vmem:[#allocation1] ss:$2 sm:$0xff] %v202
        %v205 = vld.sshfl [vmem:[#allocation1] sm:$0xff pattern:$0x75316420]
        %v206 = vld.sshfl [vmem:[#allocation1 + $0x8] sm:$0xff pattern:$0x75316420]
        %vm209 = vcmask 1043456
        %v210 = vsel %vm209, %v205, 0.0
        %v211 = vrot.slane %v210, 4
        %v212 = vadd.f32 %v210, %v211
        %v213 = vrot.slane %v212, 2
        %v214 = vadd.f32 %v212, %v213
        %v215 = vrot.slane %v214, 1
        %v216 = vadd.f32 %v214, %v215
        %v217 = vsel %vm209, %v206, 0.0
        %v218 = vrot.slane %v217, 4
        %v219 = vadd.f32 %v217, %v218
        %v220 = vrot.slane %v219, 2
        %v221 = vadd.f32 %v219, %v220
        %v222 = vrot.slane %v221, 1
        %v223 = vadd.f32 %v221, %v222
        %v224 = vmul.f32 %v201, %v201
        %226 = vst [vmem:[#allocation1] ss:$2 sm:$0xff] %v224
        %v227 = vld.sshfl [vmem:[#allocation1] sm:$0xff pattern:$0x75316420]
        %v228 = vld.sshfl [vmem:[#allocation1 + $0x8] sm:$0xff pattern:$0x75316420]
        %v231 = vsel %vm209, %v227, 0.0
        %v232 = vrot.slane %v231, 4
        %v233 = vadd.f32 %v231, %v232
        %v234 = vrot.slane %v233, 2
        %v235 = vadd.f32 %v233, %v234
        %v236 = vrot.slane %v235, 1
        %v237 = vadd.f32 %v235, %v236
        %v238 = vsel %vm209, %v228, 0.0
        %v239 = vrot.slane %v238, 4
        %v240 = vadd.f32 %v238, %v239
        %v241 = vrot.slane %v240, 2
        %v242 = vadd.f32 %v240, %v241
        %v243 = vrot.slane %v242, 1
        %v244 = vadd.f32 %v242, %v243
        %v245 = vmax.f32 %v216, 1e-20
        %v246 = vmax.f32 %v223, 1e-20
        %v247 = vrsqrt.pop %v245
        %v248 = vmul.f32 %v247, %v245
        %v249 = vmul.f32 %v248, %v247
        %v250 = vmul.f32 0.5, %v249
        %v251 = vsub.f32 1.5, %v250
        %v252 = vmul.f32 %v247, %v251
        %vm253 = vweird.f32 %v245
        %vm254 = vweird.f32 %v247
        %vm255 = vmor %vm253, %vm254
        %v256 = vsel %vm255, %v247, %v252
        %v257 = vrsqrt.pop %v246
        %v258 = vmul.f32 %v257, %v246
        %v259 = vmul.f32 %v258, %v257
        %v260 = vmul.f32 0.5, %v259
        %v261 = vsub.f32 1.5, %v260
        %v262 = vmul.f32 %v257, %v261
        %vm263 = vweird.f32 %v246
        %vm264 = vweird.f32 %v257
        %vm265 = vmor %vm263, %vm264
        %v266 = vsel %vm265, %v257, %v262
        %v269 = vrot.slane %v266, 4
        %v270 = vsel %vm209, %v256, %v269
        %v272 = vmul.f32 %v200, %v270
        %v273 = vmax.f32 %v237, 1e-20
        %v274 = vmax.f32 %v244, 1e-20
        %v275 = vrsqrt.pop %v273
        %v276 = vmul.f32 %v275, %v273
        %v277 = vmul.f32 %v276, %v275
        %v278 = vmul.f32 0.5, %v277
        %v279 = vsub.f32 1.5, %v278
        %v280 = vmul.f32 %v275, %v279
        %vm281 = vweird.f32 %v273
        %vm282 = vweird.f32 %v275
        %vm283 = vmor %vm281, %vm282
        %v284 = vsel %vm283, %v275, %v280
        %v285 = vrsqrt.pop %v274
        %v286 = vmul.f32 %v285, %v274
        %v287 = vmul.f32 %v286, %v285
        %v288 = vmul.f32 0.5, %v287
        %v289 = vsub.f32 1.5, %v288
        %v290 = vmul.f32 %v285, %v289
        %vm291 = vweird.f32 %v274
        %vm292 = vweird.f32 %v285
        %vm293 = vmor %vm291, %vm292
        %v294 = vsel %vm293, %v285, %v290
        %v297 = vrot.slane %v294, 4
        %v298 = vsel %vm209, %v284, %v297
        %v300 = vmul.f32 %v201, %v298
        %302 = vst [vmem:[#allocation1] ss:$2 sm:$0xff] %v272
        %v303 = vld.sshfl [vmem:[#allocation1] sm:$0xff pattern:$0x75316420]
        %v304 = vld.sshfl [vmem:[#allocation1 + $0x8] sm:$0xff pattern:$0x75316420]
        %307 = vxpose.xlu0.b32.start [1/16] %v303, 128
        %308 = vxpose.xlu0.b32.cont [2/16] 0.0, 128
        %309 = vxpose.xlu0.b32.cont [3/16] 0.0, 128
        %310 = vxpose.xlu0.b32.cont [4/16] 0.0, 128
        %311 = vxpose.xlu0.b32.cont [5/16] 0.0, 128
        %312 = vxpose.xlu0.b32.cont [6/16] 0.0, 128
        %313 = vxpose.xlu0.b32.cont [7/16] 0.0, 128
        %314 = vxpose.xlu0.b32.cont [8/16] 0.0, 128
        %315 = vxpose.xlu0.b32.cont [9/16] 0.0, 128
        %316 = vxpose.xlu0.b32.cont [10/16] 0.0, 128
        %317 = vxpose.xlu0.b32.cont [11/16] 0.0, 128
        %318 = vxpose.xlu0.b32.cont [12/16] 0.0, 128
        %319 = vxpose.xlu0.b32.cont [13/16] 0.0, 128
        %320 = vxpose.xlu0.b32.cont [14/16] 0.0, 128
        %321 = vxpose.xlu0.b32.cont [15/16] 0.0, 128
        %322 = vxpose.xlu0.b32.end [16/16] 0.0, 128
        %v323 = vpop.trf.xlu0
        %v324 = vpop.trf.xlu0
        %v325 = vpop.trf.xlu0
        %v326 = vpop.trf.xlu0
        %v327 = vpop.trf.xlu0
        %v328 = vpop.trf.xlu0
        %v329 = vpop.trf.xlu0
        %v330 = vpop.trf.xlu0
        %v331 = vpop.trf.xlu0
        %v332 = vpop.trf.xlu0
        %v333 = vpop.trf.xlu0
        %v334 = vpop.trf.xlu0
        %v335 = vpop.trf.xlu0
        %v336 = vpop.trf.xlu0
        %v337 = vpop.trf.xlu0
        %v338 = vpop.trf.xlu0
        %339 = vxpose.xlu0.b32.start [1/16] %v304, 128
        %340 = vxpose.xlu0.b32.cont [2/16] 0.0, 128
        %341 = vxpose.xlu0.b32.cont [3/16] 0.0, 128
        %342 = vxpose.xlu0.b32.cont [4/16] 0.0, 128
        %343 = vxpose.xlu0.b32.cont [5/16] 0.0, 128
        %344 = vxpose.xlu0.b32.cont [6/16] 0.0, 128
        %345 = vxpose.xlu0.b32.cont [7/16] 0.0, 128
        %346 = vxpose.xlu0.b32.cont [8/16] 0.0, 128
        %347 = vxpose.xlu0.b32.cont [9/16] 0.0, 128
        %348 = vxpose.xlu0.b32.cont [10/16] 0.0, 128
        %349 = vxpose.xlu0.b32.cont [11/16] 0.0, 128
        %350 = vxpose.xlu0.b32.cont [12/16] 0.0, 128
        %351 = vxpose.xlu0.b32.cont [13/16] 0.0, 128
        %352 = vxpose.xlu0.b32.cont [14/16] 0.0, 128
        %353 = vxpose.xlu0.b32.cont [15/16] 0.0, 128
        %354 = vxpose.xlu0.b32.end [16/16] 0.0, 128
        %v355 = vpop.trf.xlu0
        %v356 = vpop.trf.xlu0
        %v357 = vpop.trf.xlu0
        %v358 = vpop.trf.xlu0
        %v359 = vpop.trf.xlu0
        %v360 = vpop.trf.xlu0
        %v361 = vpop.trf.xlu0
        %v362 = vpop.trf.xlu0
        %v363 = vpop.trf.xlu0
        %v364 = vpop.trf.xlu0
        %v365 = vpop.trf.xlu0
        %v366 = vpop.trf.xlu0
        %v367 = vpop.trf.xlu0
        %v368 = vpop.trf.xlu0
        %v369 = vpop.trf.xlu0
        %v370 = vpop.trf.xlu0
        %372 = vst [vmem:[#allocation1] ss:$2 sm:$0xff] %v300
        %v373 = vld.sshfl [vmem:[#allocation1] sm:$0xff pattern:$0x75316420]
        %v374 = vld.sshfl [vmem:[#allocation1 + $0x8] sm:$0xff pattern:$0x75316420]
        %vm375 = vcmask 31744
        %v377 = vsel %vm375, %v323, 0
        %v380 = vsel %vm375, %v324, 0
        %v383 = vsel %vm375, %v325, 0
        %v386 = vsel %vm375, %v326, 0
        %v389 = vsel %vm375, %v327, 0
        %v392 = vsel %vm375, %v328, 0
        %v395 = vsel %vm375, %v329, 0
        %v398 = vsel %vm375, %v330, 0
        %v401 = vsel %vm375, %v331, 0
        %v404 = vsel %vm375, %v332, 0
        %v407 = vsel %vm375, %v333, 0
        %v410 = vsel %vm375, %v334, 0
        %v413 = vsel %vm375, %v335, 0
        %v416 = vsel %vm375, %v336, 0
        %v419 = vsel %vm375, %v337, 0
        %v422 = vsel %vm375, %v338, 0
        %v425 = vsel %vm375, %v355, 0
        %v428 = vsel %vm375, %v356, 0
        %v431 = vsel %vm375, %v357, 0
        %v434 = vsel %vm375, %v358, 0
        %v437 = vsel %vm375, %v359, 0
        %v440 = vsel %vm375, %v360, 0
        %v443 = vsel %vm375, %v361, 0
        %v446 = vsel %vm375, %v362, 0
        %v449 = vsel %vm375, %v363, 0
        %v452 = vsel %vm375, %v364, 0
        %v455 = vsel %vm375, %v365, 0
        %v458 = vsel %vm375, %v366, 0
        %v461 = vsel %vm375, %v367, 0
        %v464 = vsel %vm375, %v368, 0
        %v467 = vsel %vm375, %v369, 0
        %v470 = vsel %vm375, %v370, 0
        %v472 = vsel %vm209, %v373, 0
        %v474 = vsel %vm209, %v374, 0
        %476 = vmatpush.msra.mxu0 0.0
        %477 = vmatpush.msra.mxu0 0.0
        %478 = vmatpush.msra.mxu0 0.0
        %479 = vmatpush.msra.mxu0 0.0
        %480 = vmatpush.msra.mxu0 0.0
        %481 = vmatpush.msra.mxu0 0.0
        %482 = vmatpush.msra.mxu0 0.0
        %483 = vmatpush.msra.mxu0 0.0
        %484 = vmatpush.msra.mxu0 0.0
        %485 = vmatpush.msra.mxu0 0.0
        %486 = vmatpush.msra.mxu0 0.0
        %487 = vmatpush.msra.mxu0 0.0
        %488 = vmatpush.msra.mxu0 0.0
        %489 = vmatpush.msra.mxu0 0.0
        %490 = vmatpush.msra.mxu0 0.0
        %491 = vmatpush.msra.mxu0 %v472
        %492 = vmatmul.f32.gmra.mxu0 %v377
        %v493 = vpop.f32.mrf.mxu0
        %v494 = vadd.f32 0.0, %v493
        %495 = vmatmul.f32.gmra.mxu0 %v380
        %v496 = vpop.f32.mrf.mxu0
        %v497 = vadd.f32 0.0, %v496
        %498 = vmatmul.f32.gmra.mxu0 %v383
        %v499 = vpop.f32.mrf.mxu0
        %v500 = vadd.f32 0.0, %v499
        %501 = vmatmul.f32.gmra.mxu0 %v386
        %v502 = vpop.f32.mrf.mxu0
        %v503 = vadd.f32 0.0, %v502
        %504 = vmatmul.f32.gmra.mxu0 %v389
        %v505 = vpop.f32.mrf.mxu0
        %v506 = vadd.f32 0.0, %v505
        %507 = vmatmul.f32.gmra.mxu0 %v392
        %v508 = vpop.f32.mrf.mxu0
        %v509 = vadd.f32 0.0, %v508
        %510 = vmatmul.f32.gmra.mxu0 %v395
        %v511 = vpop.f32.mrf.mxu0
        %v512 = vadd.f32 0.0, %v511
        %513 = vmatmul.f32.gmra.mxu0 %v398
        %v514 = vpop.f32.mrf.mxu0
        %v515 = vadd.f32 0.0, %v514
        %516 = vmatmul.f32.gmra.mxu0 %v401
        %v517 = vpop.f32.mrf.mxu0
        %v518 = vadd.f32 0.0, %v517
        %519 = vmatmul.f32.gmra.mxu0 %v404
        %v520 = vpop.f32.mrf.mxu0
        %v521 = vadd.f32 0.0, %v520
        %522 = vmatmul.f32.gmra.mxu0 %v407
        %v523 = vpop.f32.mrf.mxu0
        %v524 = vadd.f32 0.0, %v523
        %525 = vmatmul.f32.gmra.mxu0 %v410
        %v526 = vpop.f32.mrf.mxu0
        %v527 = vadd.f32 0.0, %v526
        %528 = vmatmul.f32.gmra.mxu0 %v413
        %v529 = vpop.f32.mrf.mxu0
        %v530 = vadd.f32 0.0, %v529
        %531 = vmatmul.f32.gmra.mxu0 %v416
        %v532 = vpop.f32.mrf.mxu0
        %v533 = vadd.f32 0.0, %v532
        %534 = vmatmul.f32.gmra.mxu0 %v419
        %v535 = vpop.f32.mrf.mxu0
        %v536 = vadd.f32 0.0, %v535
        %537 = vmatmul.f32.gmra.mxu0 %v422
        %v538 = vpop.f32.mrf.mxu0
        %v539 = vadd.f32 0.0, %v538
        %540 = vmatmul.f32.gmra.mxu0 %v425
        %v541 = vpop.f32.mrf.mxu0
        %v542 = vadd.f32 0.0, %v541
        %543 = vmatmul.f32.gmra.mxu0 %v428
        %v544 = vpop.f32.mrf.mxu0
        %v545 = vadd.f32 0.0, %v544
        %546 = vmatmul.f32.gmra.mxu0 %v431
        %v547 = vpop.f32.mrf.mxu0
        %v548 = vadd.f32 0.0, %v547
        %549 = vmatmul.f32.gmra.mxu0 %v434
        %v550 = vpop.f32.mrf.mxu0
        %v551 = vadd.f32 0.0, %v550
        %552 = vmatmul.f32.gmra.mxu0 %v437
        %v553 = vpop.f32.mrf.mxu0
        %v554 = vadd.f32 0.0, %v553
        %555 = vmatmul.f32.gmra.mxu0 %v440
        %v556 = vpop.f32.mrf.mxu0
        %v557 = vadd.f32 0.0, %v556
        %558 = vmatmul.f32.gmra.mxu0 %v443
        %v559 = vpop.f32.mrf.mxu0
        %v560 = vadd.f32 0.0, %v559
        %561 = vmatmul.f32.gmra.mxu0 %v446
        %v562 = vpop.f32.mrf.mxu0
        %v563 = vadd.f32 0.0, %v562
        %564 = vmatmul.f32.gmra.mxu0 %v449
        %v565 = vpop.f32.mrf.mxu0
        %v566 = vadd.f32 0.0, %v565
        %567 = vmatmul.f32.gmra.mxu0 %v452
        %v568 = vpop.f32.mrf.mxu0
        %v569 = vadd.f32 0.0, %v568
        %570 = vmatmul.f32.gmra.mxu0 %v455
        %v571 = vpop.f32.mrf.mxu0
        %v572 = vadd.f32 0.0, %v571
        %573 = vmatmul.f32.gmra.mxu0 %v458
        %v574 = vpop.f32.mrf.mxu0
        %v575 = vadd.f32 0.0, %v574
        %576 = vmatmul.f32.gmra.mxu0 %v461
        %v577 = vpop.f32.mrf.mxu0
        %v578 = vadd.f32 0.0, %v577
        %579 = vmatmul.f32.gmra.mxu0 %v464
        %v580 = vpop.f32.mrf.mxu0
        %v581 = vadd.f32 0.0, %v580
        %582 = vmatmul.f32.gmra.mxu0 %v467
        %v583 = vpop.f32.mrf.mxu0
        %v584 = vadd.f32 0.0, %v583
        %585 = vmatmul.f32.gmra.mxu0 %v470
        %v586 = vpop.f32.mrf.mxu0
        %v587 = vadd.f32 0.0, %v586
        %588 = vdwg.mxu0
        %589 = vmatpush.msra.mxu0 0.0
        %590 = vmatpush.msra.mxu0 0.0
        %591 = vmatpush.msra.mxu0 0.0
        %592 = vmatpush.msra.mxu0 0.0
        %593 = vmatpush.msra.mxu0 0.0
        %594 = vmatpush.msra.mxu0 0.0
        %595 = vmatpush.msra.mxu0 0.0
        %596 = vmatpush.msra.mxu0 0.0
        %597 = vmatpush.msra.mxu0 0.0
        %598 = vmatpush.msra.mxu0 0.0
        %599 = vmatpush.msra.mxu0 0.0
        %600 = vmatpush.msra.mxu0 0.0
        %601 = vmatpush.msra.mxu0 0.0
        %602 = vmatpush.msra.mxu0 0.0
        %603 = vmatpush.msra.mxu0 0.0
        %604 = vmatpush.msra.mxu0 %v474
        %605 = vmatmul.f32.gmra.mxu0 %v377
        %v606 = vpop.f32.mrf.mxu0
        %v607 = vadd.f32 0.0, %v606
        %608 = vmatmul.f32.gmra.mxu0 %v380
        %v609 = vpop.f32.mrf.mxu0
        %v610 = vadd.f32 0.0, %v609
        %611 = vmatmul.f32.gmra.mxu0 %v383
        %v612 = vpop.f32.mrf.mxu0
        %v613 = vadd.f32 0.0, %v612
        %614 = vmatmul.f32.gmra.mxu0 %v386
        %v615 = vpop.f32.mrf.mxu0
        %v616 = vadd.f32 0.0, %v615
        %617 = vmatmul.f32.gmra.mxu0 %v389
        %v618 = vpop.f32.mrf.mxu0
        %v619 = vadd.f32 0.0, %v618
        %620 = vmatmul.f32.gmra.mxu0 %v392
        %v621 = vpop.f32.mrf.mxu0
        %v622 = vadd.f32 0.0, %v621
        %623 = vmatmul.f32.gmra.mxu0 %v395
        %v624 = vpop.f32.mrf.mxu0
        %v625 = vadd.f32 0.0, %v624
        %626 = vmatmul.f32.gmra.mxu0 %v398
        %v627 = vpop.f32.mrf.mxu0
        %v628 = vadd.f32 0.0, %v627
        %629 = vmatmul.f32.gmra.mxu0 %v401
        %v630 = vpop.f32.mrf.mxu0
        %v631 = vadd.f32 0.0, %v630
        %632 = vmatmul.f32.gmra.mxu0 %v404
        %v633 = vpop.f32.mrf.mxu0
        %v634 = vadd.f32 0.0, %v633
        %635 = vmatmul.f32.gmra.mxu0 %v407
        %v636 = vpop.f32.mrf.mxu0
        %v637 = vadd.f32 0.0, %v636
        %638 = vmatmul.f32.gmra.mxu0 %v410
        %v639 = vpop.f32.mrf.mxu0
        %v640 = vadd.f32 0.0, %v639
        %641 = vmatmul.f32.gmra.mxu0 %v413
        %v642 = vpop.f32.mrf.mxu0
        %v643 = vadd.f32 0.0, %v642
        %644 = vmatmul.f32.gmra.mxu0 %v416
        %v645 = vpop.f32.mrf.mxu0
        %v646 = vadd.f32 0.0, %v645
        %647 = vmatmul.f32.gmra.mxu0 %v419
        %v648 = vpop.f32.mrf.mxu0
        %v649 = vadd.f32 0.0, %v648
        %650 = vmatmul.f32.gmra.mxu0 %v422
        %v651 = vpop.f32.mrf.mxu0
        %v652 = vadd.f32 0.0, %v651
        %653 = vmatmul.f32.gmra.mxu0 %v425
        %v654 = vpop.f32.mrf.mxu0
        %v655 = vadd.f32 0.0, %v654
        %656 = vmatmul.f32.gmra.mxu0 %v428
        %v657 = vpop.f32.mrf.mxu0
        %v658 = vadd.f32 0.0, %v657
        %659 = vmatmul.f32.gmra.mxu0 %v431
        %v660 = vpop.f32.mrf.mxu0
        %v661 = vadd.f32 0.0, %v660
        %662 = vmatmul.f32.gmra.mxu0 %v434
        %v663 = vpop.f32.mrf.mxu0
        %v664 = vadd.f32 0.0, %v663
        %665 = vmatmul.f32.gmra.mxu0 %v437
        %v666 = vpop.f32.mrf.mxu0
        %v667 = vadd.f32 0.0, %v666
        %668 = vmatmul.f32.gmra.mxu0 %v440
        %v669 = vpop.f32.mrf.mxu0
        %v670 = vadd.f32 0.0, %v669
        %671 = vmatmul.f32.gmra.mxu0 %v443
        %v672 = vpop.f32.mrf.mxu0
        %v673 = vadd.f32 0.0, %v672
        %674 = vmatmul.f32.gmra.mxu0 %v446
        %v675 = vpop.f32.mrf.mxu0
        %v676 = vadd.f32 0.0, %v675
        %677 = vmatmul.f32.gmra.mxu0 %v449
        %v678 = vpop.f32.mrf.mxu0
        %v679 = vadd.f32 0.0, %v678
        %680 = vmatmul.f32.gmra.mxu0 %v452
        %v681 = vpop.f32.mrf.mxu0
        %v682 = vadd.f32 0.0, %v681
        %683 = vmatmul.f32.gmra.mxu0 %v455
        %v684 = vpop.f32.mrf.mxu0
        %v685 = vadd.f32 0.0, %v684
        %686 = vmatmul.f32.gmra.mxu0 %v458
        %v687 = vpop.f32.mrf.mxu0
        %v688 = vadd.f32 0.0, %v687
        %689 = vmatmul.f32.gmra.mxu0 %v461
        %v690 = vpop.f32.mrf.mxu0
        %v691 = vadd.f32 0.0, %v690
        %692 = vmatmul.f32.gmra.mxu0 %v464
        %v693 = vpop.f32.mrf.mxu0
        %v694 = vadd.f32 0.0, %v693
        %695 = vmatmul.f32.gmra.mxu0 %v467
        %v696 = vpop.f32.mrf.mxu0
        %v697 = vadd.f32 0.0, %v696
        %698 = vmatmul.f32.gmra.mxu0 %v470
        %v699 = vpop.f32.mrf.mxu0
        %v700 = vadd.f32 0.0, %v699
        %701 = vdwg.mxu0
        %v702 = vmax.f32 %v494, %v500
        %v703 = vmax.f32 %v497, %v503
        %v704 = vmax.f32 %v702, %v506
        %v705 = vmax.f32 %v703, %v509
        %v706 = vmax.f32 %v704, %v512
        %v707 = vmax.f32 %v705, %v515
        %v708 = vmax.f32 %v706, %v518
        %v709 = vmax.f32 %v707, %v521
        %v710 = vmax.f32 %v708, %v524
        %v711 = vmax.f32 %v709, %v527
        %v712 = vmax.f32 %v710, %v530
        %v713 = vmax.f32 %v711, %v533
        %v714 = vmax.f32 %v712, %v536
        %v715 = vmax.f32 %v713, %v539
        %v716 = vmax.f32 %v714, %v542
        %v717 = vmax.f32 %v715, %v545
        %v718 = vmax.f32 %v716, %v548
        %v719 = vmax.f32 %v717, %v551
        %v720 = vmax.f32 %v718, %v554
        %v721 = vmax.f32 %v719, %v557
        %v722 = vmax.f32 %v720, %v560
        %v723 = vmax.f32 %v721, %v563
        %v724 = vmax.f32 %v722, %v566
        %v725 = vmax.f32 %v723, %v569
        %v726 = vmax.f32 %v724, %v572
        %v727 = vmax.f32 %v725, %v575
        %v728 = vmax.f32 %v726, %v578
        %v729 = vmax.f32 %v727, %v581
        %v730 = vmax.f32 %v728, %v584
        %v731 = vmax.f32 %v729, %v587
        %v732 = vmax.f32 %v730, %v731
        %v733 = vrot.slane %v732, 4
        %v734 = vmax.f32 %v732, %v733
        %v735 = vrot.slane %v734, 2
        %v736 = vmax.f32 %v734, %v735
        %v737 = vrot.slane %v736, 1
        %v738 = vmax.f32 %v736, %v737
        %v739 = vmax.f32 %v607, %v613
        %v740 = vmax.f32 %v610, %v616
        %v741 = vmax.f32 %v739, %v619
        %v742 = vmax.f32 %v740, %v622
        %v743 = vmax.f32 %v741, %v625
        %v744 = vmax.f32 %v742, %v628
        %v745 = vmax.f32 %v743, %v631
        %v746 = vmax.f32 %v744, %v634
        %v747 = vmax.f32 %v745, %v637
        %v748 = vmax.f32 %v746, %v640
        %v749 = vmax.f32 %v747, %v643
        %v750 = vmax.f32 %v748, %v646
        %v751 = vmax.f32 %v749, %v649
        %v752 = vmax.f32 %v750, %v652
        %v753 = vmax.f32 %v751, %v655
        %v754 = vmax.f32 %v752, %v658
        %v755 = vmax.f32 %v753, %v661
        %v756 = vmax.f32 %v754, %v664
        %v757 = vmax.f32 %v755, %v667
        %v758 = vmax.f32 %v756, %v670
        %v759 = vmax.f32 %v757, %v673
        %v760 = vmax.f32 %v758, %v676
        %v761 = vmax.f32 %v759, %v679
        %v762 = vmax.f32 %v760, %v682
        %v763 = vmax.f32 %v761, %v685
        %v764 = vmax.f32 %v762, %v688
        %v765 = vmax.f32 %v763, %v691
        %v766 = vmax.f32 %v764, %v694
        %v767 = vmax.f32 %v765, %v697
        %v768 = vmax.f32 %v766, %v700
        %v769 = vmax.f32 %v767, %v768
        %v770 = vrot.slane %v769, 4
        %v771 = vmax.f32 %v769, %v770
        %v772 = vrot.slane %v771, 2
        %v773 = vmax.f32 %v771, %v772
        %v774 = vrot.slane %v773, 1
        %v775 = vmax.f32 %v773, %v774
        %v776 = vadd.f32 %v738, %v775
        %777 = vadd.xlane.f32.xlu0 %v776
        %v778 = vpop.xlane.xlu0 %777
        %s779 = vtos %v778
        %v780 = vmax.f32 %v494, %v607
        %781 = vmax.xlane.f32.xlu0 %v780
        %v782 = vpop.xlane.xlu0 %781
        %v783 = vmax.f32 %v497, %v610
        %784 = vmax.xlane.f32.xlu0 %v783
        %v785 = vpop.xlane.xlu0 %784
        %v786 = vmax.f32 %v500, %v613
        %787 = vmax.xlane.f32.xlu0 %v786
        %v788 = vpop.xlane.xlu0 %787
        %v789 = vmax.f32 %v503, %v616
        %790 = vmax.xlane.f32.xlu0 %v789
        %v791 = vpop.xlane.xlu0 %790
        %v792 = vmax.f32 %v506, %v619
        %793 = vmax.xlane.f32.xlu0 %v792
        %v794 = vpop.xlane.xlu0 %793
        %v795 = vmax.f32 %v509, %v622
        %796 = vmax.xlane.f32.xlu0 %v795
        %v797 = vpop.xlane.xlu0 %796
        %v798 = vmax.f32 %v512, %v625
        %799 = vmax.xlane.f32.xlu0 %v798
        %v800 = vpop.xlane.xlu0 %799
        %v801 = vmax.f32 %v515, %v628
        %802 = vmax.xlane.f32.xlu0 %v801
        %v803 = vpop.xlane.xlu0 %802
        %v804 = vmax.f32 %v518, %v631
        %805 = vmax.xlane.f32.xlu0 %v804
        %v806 = vpop.xlane.xlu0 %805
        %v807 = vmax.f32 %v521, %v634
        %808 = vmax.xlane.f32.xlu0 %v807
        %v809 = vpop.xlane.xlu0 %808
        %v810 = vmax.f32 %v524, %v637
        %811 = vmax.xlane.f32.xlu0 %v810
        %v812 = vpop.xlane.xlu0 %811
        %v813 = vmax.f32 %v527, %v640
        %814 = vmax.xlane.f32.xlu0 %v813
        %v815 = vpop.xlane.xlu0 %814
        %v816 = vmax.f32 %v530, %v643
        %817 = vmax.xlane.f32.xlu0 %v816
        %v818 = vpop.xlane.xlu0 %817
        %v819 = vmax.f32 %v533, %v646
        %820 = vmax.xlane.f32.xlu0 %v819
        %v821 = vpop.xlane.xlu0 %820
        %v822 = vmax.f32 %v536, %v649
        %823 = vmax.xlane.f32.xlu0 %v822
        %v824 = vpop.xlane.xlu0 %823
        %v825 = vmax.f32 %v539, %v652
        %826 = vmax.xlane.f32.xlu0 %v825
        %v827 = vpop.xlane.xlu0 %826
        %v828 = vmax.f32 %v542, %v655
        %829 = vmax.xlane.f32.xlu0 %v828
        %v830 = vpop.xlane.xlu0 %829
        %v831 = vmax.f32 %v545, %v658
        %832 = vmax.xlane.f32.xlu0 %v831
        %v833 = vpop.xlane.xlu0 %832
        %v834 = vmax.f32 %v548, %v661
        %835 = vmax.xlane.f32.xlu0 %v834
        %v836 = vpop.xlane.xlu0 %835
        %v837 = vmax.f32 %v551, %v664
        %838 = vmax.xlane.f32.xlu0 %v837
        %v839 = vpop.xlane.xlu0 %838
        %v840 = vmax.f32 %v554, %v667
        %841 = vmax.xlane.f32.xlu0 %v840
        %v842 = vpop.xlane.xlu0 %841
        %v843 = vmax.f32 %v557, %v670
        %844 = vmax.xlane.f32.xlu0 %v843
        %v845 = vpop.xlane.xlu0 %844
        %v846 = vmax.f32 %v560, %v673
        %847 = vmax.xlane.f32.xlu0 %v846
        %v848 = vpop.xlane.xlu0 %847
        %v849 = vmax.f32 %v563, %v676
        %850 = vmax.xlane.f32.xlu0 %v849
        %v851 = vpop.xlane.xlu0 %850
        %v852 = vmax.f32 %v566, %v679
        %853 = vmax.xlane.f32.xlu0 %v852
        %v854 = vpop.xlane.xlu0 %853
        %v855 = vmax.f32 %v569, %v682
        %856 = vmax.xlane.f32.xlu0 %v855
        %v857 = vpop.xlane.xlu0 %856
        %v858 = vmax.f32 %v572, %v685
        %859 = vmax.xlane.f32.xlu0 %v858
        %v860 = vpop.xlane.xlu0 %859
        %v861 = vmax.f32 %v575, %v688
        %862 = vmax.xlane.f32.xlu0 %v861
        %v863 = vpop.xlane.xlu0 %862
        %v864 = vmax.f32 %v578, %v691
        %865 = vmax.xlane.f32.xlu0 %v864
        %v866 = vpop.xlane.xlu0 %865
        %v867 = vmax.f32 %v581, %v694
        %868 = vmax.xlane.f32.xlu0 %v867
        %v869 = vpop.xlane.xlu0 %868
        %v870 = vmax.f32 %v584, %v697
        %871 = vmax.xlane.f32.xlu0 %v870
        %v872 = vpop.xlane.xlu0 %871
        %v873 = vmax.f32 %v587, %v700
        %874 = vmax.xlane.f32.xlu0 %v873
        %v875 = vpop.xlane.xlu0 %874
        %s876 = smul.f32 %s779, 0.00390625
        %vm877 = vcmask 7168
        %v878 = vsel %vm877, %v782, 0.0
        %v879 = vsel %vm877, %v785, 0.0
        %v880 = vadd.f32 %v878, %v879
        %v881 = vsel %vm877, %v788, 0.0
        %v882 = vadd.f32 %v880, %v881
        %v883 = vsel %vm877, %v791, 0.0
        %v884 = vadd.f32 %v882, %v883
        %v885 = vsel %vm877, %v794, 0.0
        %v886 = vadd.f32 %v884, %v885
        %v887 = vsel %vm877, %v797, 0.0
        %v888 = vadd.f32 %v886, %v887
        %v889 = vsel %vm877, %v800, 0.0
        %v890 = vadd.f32 %v888, %v889
        %v891 = vsel %vm877, %v803, 0.0
        %v892 = vadd.f32 %v890, %v891
        %v893 = vsel %vm877, %v806, 0.0
        %v894 = vadd.f32 %v892, %v893
        %v895 = vsel %vm877, %v809, 0.0
        %v896 = vadd.f32 %v894, %v895
        %v897 = vsel %vm877, %v812, 0.0
        %v898 = vadd.f32 %v896, %v897
        %v899 = vsel %vm877, %v815, 0.0
        %v900 = vadd.f32 %v898, %v899
        %v901 = vsel %vm877, %v818, 0.0
        %v902 = vadd.f32 %v900, %v901
        %v903 = vsel %vm877, %v821, 0.0
        %v904 = vadd.f32 %v902, %v903
        %v905 = vsel %vm877, %v824, 0.0
        %v906 = vadd.f32 %v904, %v905
        %v907 = vsel %vm877, %v827, 0.0
        %v908 = vadd.f32 %v906, %v907
        %v909 = vsel %vm877, %v830, 0.0
        %v910 = vadd.f32 %v908, %v909
        %v911 = vsel %vm877, %v833, 0.0
        %v912 = vadd.f32 %v910, %v911
        %v913 = vsel %vm877, %v836, 0.0
        %v914 = vadd.f32 %v912, %v913
        %v915 = vsel %vm877, %v839, 0.0
        %v916 = vadd.f32 %v914, %v915
        %v917 = vsel %vm877, %v842, 0.0
        %v918 = vadd.f32 %v916, %v917
        %v919 = vsel %vm877, %v845, 0.0
        %v920 = vadd.f32 %v918, %v919
        %v921 = vsel %vm877, %v848, 0.0
        %v922 = vadd.f32 %v920, %v921
        %v923 = vsel %vm877, %v851, 0.0
        %v924 = vadd.f32 %v922, %v923
        %v925 = vsel %vm877, %v854, 0.0
        %v926 = vadd.f32 %v924, %v925
        %v927 = vsel %vm877, %v857, 0.0
        %v928 = vadd.f32 %v926, %v927
        %v929 = vsel %vm877, %v860, 0.0
        %v930 = vadd.f32 %v928, %v929
        %v931 = vsel %vm877, %v863, 0.0
        %v932 = vadd.f32 %v930, %v931
        %v933 = vsel %vm877, %v866, 0.0
        %v934 = vadd.f32 %v932, %v933
        %v935 = vsel %vm877, %v869, 0.0
        %v936 = vadd.f32 %v934, %v935
        %v937 = vsel %vm877, %v872, 0.0
        %v938 = vadd.f32 %v936, %v937
        %v939 = vsel %vm877, %v875, 0.0
        %v940 = vadd.f32 %v938, %v939
        %941 = vadd.xlane.f32.xlu0 %v940
        %v942 = vpop.xlane.xlu0 %941
        %v943 = vrot.slane %v942, 4
        %v944 = vadd.f32 %v942, %v943
        %v945 = vrot.slane %v944, 2
        %v946 = vadd.f32 %v944, %v945
        %v947 = vrot.slane %v946, 1
        %v948 = vadd.f32 %v946, %v947
        %s949 = vtos %v948
        %v950 = vrcp.pop 256.0
        %v951 = vmul.f32 256.0, %v950
        %v952 = vsub.f32 1.0, %v951
        %v953 = vmul.f32 %v950, %v952
        %v954 = vadd.f32 %v950, %v953
        %vm955 = vweird.f32 %v950
        %v956 = vsel %vm955, %v950, %v954
        %s957 = vtos %v956
        %s958 = smul.f32 %s949, %s957
        %s959 = smin.f32 %s876, %s958
        %s960 = ssub.f32 1.0, %s959
        %962 = vst [vmem:[#allocation1] ss:$2 sm:$0xff] %v200
        %v963 = vld.sshfl [vmem:[#allocation1] sm:$0xff pattern:$0x75316420]
        %v964 = vld.sshfl [vmem:[#allocation1 + $0x8] sm:$0xff pattern:$0x75316420]
        %v967 = vsel %vm209, %v963, 0.0
        %v968 = vsel %vm209, %v964, 0.0
        %v969 = vadd.f32 %v967, %v968
        %970 = vadd.xlane.f32.xlu0 %v969
        %v971 = vpop.xlane.xlu0 %970
        %v972 = vrcp.pop 256.0
        %v973 = vmul.f32 256.0, %v972
        %v974 = vsub.f32 1.0, %v973
        %v975 = vmul.f32 %v972, %v974
        %v976 = vadd.f32 %v972, %v975
        %vm977 = vweird.f32 %v972
        %v978 = vsel %vm977, %v972, %v976
        %v979 = vmul.f32 %v971, %v978
        %981 = vst [vmem:[#allocation1] ss:$2 sm:$0xff] %v201
        %v982 = vld.sshfl [vmem:[#allocation1] sm:$0xff pattern:$0x75316420]
        %v983 = vld.sshfl [vmem:[#allocation1 + $0x8] sm:$0xff pattern:$0x75316420]
        %v986 = vsel %vm209, %v982, 0.0
        %v987 = vsel %vm209, %v983, 0.0
        %v988 = vadd.f32 %v986, %v987
        %989 = vadd.xlane.f32.xlu0 %v988
        %v990 = vpop.xlane.xlu0 %989
        %v991 = vmul.f32 %v990, %v978
        %v992 = vsub.f32 %v979, %v991
        %v993 = vand.u32 2147483647, %v992
        %vm994 = vcmask 3072
        %v995 = vsel %vm994, %v993, 0.0
        %996 = vadd.xlane.f32.xlu0 %v995
        %v997 = vpop.xlane.xlu0 %996
        %v998 = vrot.slane %v997, 4
        %v999 = vadd.f32 %v997, %v998
        %v1000 = vrot.slane %v999, 2
        %v1001 = vadd.f32 %v999, %v1000
        %v1002 = vrot.slane %v1001, 1
        %v1003 = vadd.f32 %v1001, %v1002
        %s1004 = vtos %v1003
        %v1005 = vrcp.pop 4.0
        %v1006 = vmul.f32 4.0, %v1005
        %v1007 = vsub.f32 1.0, %v1006
        %v1008 = vmul.f32 %v1005, %v1007
        %v1009 = vadd.f32 %v1005, %v1008
        %vm1010 = vweird.f32 %v1005
        %v1011 = vsel %vm1010, %v1005, %v1009
        %s1012 = vtos %v1011
        %s1013 = smul.f32 %s1004, %s1012
        %v1016 = vunpack.c.l.s4 839922192
        %v1017 = vunpack.c.0.s8 %v1016
        %v1018 = vperm.slane %v979, %v1017
        %v1020 = vsub.f32 %v200, %v1018
        %v1023 = vunpack.c.l.s4 839922192
        %v1024 = vunpack.c.0.s8 %v1023
        %v1025 = vperm.slane %v991, %v1024
        %v1027 = vsub.f32 %v201, %v1025
        %1029 = vst [vmem:[#allocation1] ss:$2 sm:$0xff] %v1020
        %v1030 = vld.sshfl [vmem:[#allocation1] sm:$0xff pattern:$0x75316420]
        %v1031 = vld.sshfl [vmem:[#allocation1 + $0x8] sm:$0xff pattern:$0x75316420]
        %1034 = vst [vmem:[#allocation1] ss:$2 sm:$0xff] %v1020
        %v1035 = vld.sshfl [vmem:[#allocation1] sm:$0xff pattern:$0x75316420]
        %v1036 = vld.sshfl [vmem:[#allocation1 + $0x8] sm:$0xff pattern:$0x75316420]
        %1039 = vmatpush.xpose.msra.mxu0 0.0
        %1040 = vmatpush.xpose.msra.mxu0 0.0
        %1041 = vmatpush.xpose.msra.mxu0 0.0
        %1042 = vmatpush.xpose.msra.mxu0 0.0
        %1043 = vmatpush.xpose.msra.mxu0 0.0
        %1044 = vmatpush.xpose.msra.mxu0 0.0
        %1045 = vmatpush.xpose.msra.mxu0 0.0
        %1046 = vmatpush.xpose.msra.mxu0 0.0
        %1047 = vmatpush.xpose.msra.mxu0 0.0
        %1048 = vmatpush.xpose.msra.mxu0 0.0
        %1049 = vmatpush.xpose.msra.mxu0 0.0
        %1050 = vmatpush.xpose.msra.mxu0 0.0
        %1051 = vmatpush.xpose.msra.mxu0 0.0
        %1052 = vmatpush.xpose.msra.mxu0 0.0
        %1053 = vmatpush.xpose.msra.mxu0 0.0
        %1054 = vmatpush.xpose.msra.mxu0 %v1035
        %1055 = vmatmul.f32.gmra.mxu0 %v1030
        %v1056 = vpop.f32.mrf.mxu0
        %v1057 = vadd.f32 0.0, %v1056
        %1058 = vdwg.mxu0
        %1059 = vmatpush.xpose.msra.mxu0 0.0
        %1060 = vmatpush.xpose.msra.mxu0 0.0
        %1061 = vmatpush.xpose.msra.mxu0 0.0
        %1062 = vmatpush.xpose.msra.mxu0 0.0
        %1063 = vmatpush.xpose.msra.mxu0 0.0
        %1064 = vmatpush.xpose.msra.mxu0 0.0
        %1065 = vmatpush.xpose.msra.mxu0 0.0
        %1066 = vmatpush.xpose.msra.mxu0 0.0
        %1067 = vmatpush.xpose.msra.mxu0 0.0
        %1068 = vmatpush.xpose.msra.mxu0 0.0
        %1069 = vmatpush.xpose.msra.mxu0 0.0
        %1070 = vmatpush.xpose.msra.mxu0 0.0
        %1071 = vmatpush.xpose.msra.mxu0 0.0
        %1072 = vmatpush.xpose.msra.mxu0 0.0
        %1073 = vmatpush.xpose.msra.mxu0 0.0
        %1074 = vmatpush.xpose.msra.mxu0 %v1036
        %1075 = vmatmul.f32.gmra.mxu0 %v1031
        %v1076 = vpop.f32.mrf.mxu0
        %v1077 = vadd.f32 %v1057, %v1076
        %1078 = vdwg.mxu0
        %v1079 = vmul.f32 %v1077, 0.003921569
        %1081 = vst [vmem:[#allocation1] ss:$2 sm:$0xff] %v1027
        %v1082 = vld.sshfl [vmem:[#allocation1] sm:$0xff pattern:$0x75316420]
        %v1083 = vld.sshfl [vmem:[#allocation1 + $0x8] sm:$0xff pattern:$0x75316420]
        %1086 = vst [vmem:[#allocation1] ss:$2 sm:$0xff] %v1027
        %v1087 = vld.sshfl [vmem:[#allocation1] sm:$0xff pattern:$0x75316420]
        %v1088 = vld.sshfl [vmem:[#allocation1 + $0x8] sm:$0xff pattern:$0x75316420]
        %1091 = vmatpush.xpose.msra.mxu0 0.0
        %1092 = vmatpush.xpose.msra.mxu0 0.0
        %1093 = vmatpush.xpose.msra.mxu0 0.0
        %1094 = vmatpush.xpose.msra.mxu0 0.0
        %1095 = vmatpush.xpose.msra.mxu0 0.0
        %1096 = vmatpush.xpose.msra.mxu0 0.0
        %1097 = vmatpush.xpose.msra.mxu0 0.0
        %1098 = vmatpush.xpose.msra.mxu0 0.0
        %1099 = vmatpush.xpose.msra.mxu0 0.0
        %1100 = vmatpush.xpose.msra.mxu0 0.0
        %1101 = vmatpush.xpose.msra.mxu0 0.0
        %1102 = vmatpush.xpose.msra.mxu0 0.0
        %1103 = vmatpush.xpose.msra.mxu0 0.0
        %1104 = vmatpush.xpose.msra.mxu0 0.0
        %1105 = vmatpush.xpose.msra.mxu0 0.0
        %1106 = vmatpush.xpose.msra.mxu0 %v1087
        %1107 = vmatmul.f32.gmra.mxu0 %v1082
        %v1108 = vpop.f32.mrf.mxu0
        %v1109 = vadd.f32 0.0, %v1108
        %1110 = vdwg.mxu0
        %1111 = vmatpush.xpose.msra.mxu0 0.0
        %1112 = vmatpush.xpose.msra.mxu0 0.0
        %1113 = vmatpush.xpose.msra.mxu0 0.0
        %1114 = vmatpush.xpose.msra.mxu0 0.0
        %1115 = vmatpush.xpose.msra.mxu0 0.0
        %1116 = vmatpush.xpose.msra.mxu0 0.0
        %1117 = vmatpush.xpose.msra.mxu0 0.0
        %1118 = vmatpush.xpose.msra.mxu0 0.0
        %1119 = vmatpush.xpose.msra.mxu0 0.0
        %1120 = vmatpush.xpose.msra.mxu0 0.0
        %1121 = vmatpush.xpose.msra.mxu0 0.0
        %1122 = vmatpush.xpose.msra.mxu0 0.0
        %1123 = vmatpush.xpose.msra.mxu0 0.0
        %1124 = vmatpush.xpose.msra.mxu0 0.0
        %1125 = vmatpush.xpose.msra.mxu0 0.0
        %1126 = vmatpush.xpose.msra.mxu0 %v1088
        %1127 = vmatmul.f32.gmra.mxu0 %v1083
        %v1128 = vpop.f32.mrf.mxu0
        %v1129 = vadd.f32 %v1109, %v1128
        %1130 = vdwg.mxu0
        %v1131 = vmul.f32 %v1129, 0.003921569
        %v1132 = vsub.f32 %v1079, %v1131
        %v1133 = vand.u32 2147483647, %v1132
        %vm1134 = vcmask 27648
        %v1135 = vsel %vm1134, %v1133, 0.0
        %1136 = vadd.xlane.f32.xlu0 %v1135
        %v1137 = vpop.xlane.xlu0 %1136
        %v1138 = vrot.slane %v1137, 4
        %v1139 = vadd.f32 %v1137, %v1138
        %v1140 = vrot.slane %v1139, 2
        %v1141 = vadd.f32 %v1139, %v1140
        %v1142 = vrot.slane %v1141, 1
        %v1143 = vadd.f32 %v1141, %v1142
        %s1144 = vtos %v1143
        %v1145 = vrcp.pop 16.0
        %v1146 = vmul.f32 16.0, %v1145
        %v1147 = vsub.f32 1.0, %v1146
        %v1148 = vmul.f32 %v1145, %v1147
        %v1149 = vadd.f32 %v1145, %v1148
        %vm1150 = vweird.f32 %v1145
        %v1151 = vsel %vm1150, %v1145, %v1149
        %s1152 = vtos %v1151
        %s1153 = smul.f32 %s1144, %s1152
        %s1154 = sadd.f32 %s960, %s1013
        %s1155 = sadd.f32 %s1154, %s1153
        %v1156 = vstv %s1155
        %vm1157 = vcmask 0
        %1158 = vst.msk [vmem:[%s199] sm:$0x1] %vm1157, %v1156
        %p1159 = scmp.lt.s32.totalorder %s19, 1
        %s1160 = scalar_select %p1159, %s19, 1
        %s1161 = scalar_lea.vmem %s2, %s1160
        // Predicated region
        $region37: #{tpu_custom_call.1} parent=27 // pred_check
          %p1162 = pneg %p89
        $region38: #{tpu_custom_call.1} parent=27 // pred_check_branch
          %1164 = sbr.rel (%p1162) target = $region40
        $region39: #{tpu_custom_call.1} parent=27 // pred_region
          _
        $region40: #{tpu_custom_call.1} parent=27 // pred_fallthru
          _
      $region28: #{tpu_custom_call.1} parent=5 // pred_fallthru
        _
      %p1165 = scmp.le.s32.totalorder 2, %s14
      // Predicated region
      $region41: #{tpu_custom_call.1} parent=5 // pred_check
        %p1166 = pneg %p1165
      $region42: #{tpu_custom_call.1} parent=5 // pred_check_branch
        %1168 = sbr.rel (%p1166) target = $region44
      $region43: #{tpu_custom_call.1} parent=5 // pred_region
        %s1169 = ssub.s32 %s14, 2
        // Predicated region
        $region45: #{tpu_custom_call.1} parent=43 // pred_check
          %p1170 = pneg %p95
        $region46: #{tpu_custom_call.1} parent=43 // pred_check_branch
          %1172 = sbr.rel (%p1170) target = $region48
        $region47: #{tpu_custom_call.1} parent=43 // pred_region
          %p1173 = scmp.lt.s32.totalorder %s20, 1
          %s1174 = scalar_select %p1173, %s20, 1
          %s1175 = scalar_lea.vmem %s2, %s1174
        $region48: #{tpu_custom_call.1} parent=43 // pred_fallthru
          _
      $region44: #{tpu_custom_call.1} parent=5 // pred_fallthru
        _
    $region6: #{tpu_custom_call.1} parent=1 // loop_footer
      %s18 = sadd.s32 1, %s14
    $region7: #{tpu_custom_call.1} parent=1 // loop_footer_branch
      %13 = sbr.rel target = $region3
    $region8: #{tpu_custom_call.1} parent=1 // loop_exit
      _
    %1176 = vsyncpa [#allocation3], 1
    %s1177 = scalar_lea.sflag [#allocation3], 1
    %1178 = vsyncpa %s1177, 1
    %1179 = vsyncpa [#allocation5], 1
    %s1180 = scalar_lea.sflag [#allocation5], 1
    %1181 = vsyncpa %s1180, 1

</llo_original>
